<compile_context>
chip_gen: v5e
topology: v5e:2x2
jax: 0.10.0
libtpu: 0.0.40
codegen_flags: <defaults>
</compile_context>

<pallas_src>
import functools

import jax
import jax.numpy as jnp
from jax import lax
from jax.experimental import pallas as pl
from jax.experimental.pallas import tpu as pltpu


def _relu6(x):
    return jnp.minimum(jnp.maximum(x, 0.0), 6.0)


def residual_block_kernel(x_ref, w_ref, o_ref, *, N, C, M, H, W):
    """Single-step fused kernel.

    x_ref : (N*C, H*W) f32 -- batch fused into the SUBLANE axis, spatial in LANES
    w_ref : (max(M,C), 2*C + M + 13) f32 -- packed BN-folded weights + biases
    o_ref : (N*C, H*W) f32 -- aliased with x's HBM buffer
    """
    HW = H * W
    x = x_ref[...]                                    # (N*C, HW)
    wp = w_ref[...]                                   # whole pack: one small tile

    # Static unpack of the weight slab (all pieces live inside one (8,128) tile).
    c0 = 0
    w1 = wp[:M, c0:c0 + C]; c0 += C                   # (M, C) 1x1 conv C->M (folded)
    dw = wp[:M, c0:c0 + 9]; c0 += 9                   # (M, 9) 3x3 depthwise taps
    w3 = wp[:C, c0:c0 + M]; c0 += M                   # (C, M) 1x1 conv M->C
    w4 = wp[:C, c0:c0 + C]; c0 += C                   # (C, C) 1x1 conv C->C
    b1 = wp[:M, c0:c0 + 1]; c0 += 1                   # (M, 1)
    b2 = wp[:M, c0:c0 + 1]; c0 += 1                   # (M, 1)
    b3 = wp[:C, c0:c0 + 1]; c0 += 1                   # (C, 1)
    b4 = wp[:C, c0:c0 + 1]                            # (C, 1)

    # Depthwise border masks: depend only on the lane (spatial) index; shared by
    # every batch and channel.  W power-of-two -> shift/and, no integer divide.
    pos = lax.broadcasted_iota(jnp.int32, (1, HW), 1)
    if W & (W - 1) == 0:
        row = pos >> (W.bit_length() - 1)
        col = pos & (W - 1)
    else:
        row = pos // W
        col = pos - row * W
    row_ok = {-1: row >= 1, 1: row <= H - 2}
    col_ok = {-1: col >= 1, 1: col <= W - 2}

    outs = []
    for n in range(N):                                # fully unrolled; N is tiny
        xb = x[n * C:(n + 1) * C, :]                  # (C, HW): residual + stage-1 input

        # --- stage 1: 1x1 conv C->M (+BN) + ReLU6 : VPU broadcast-FMAs --------
        acc1 = jnp.zeros((M, HW), jnp.float32)
        for c in range(C):
            acc1 = acc1 + xb[c:c + 1, :] * w1[:, c:c + 1]
        h1 = _relu6(acc1 + b1)                        # (M, HW)

        # --- stage 2: 3x3 depthwise conv (pad=1, +BN) + ReLU6 ------------------
        # Spatial index is the lane axis; shifts are lane rotations on the XLU.
        acc2 = jnp.zeros((M, HW), jnp.float32)
        for dy in (-1, 0, 1):
            for dx in (-1, 0, 1):
                tap = (dy + 1) * 3 + (dx + 1)         # taps row-major (ky, kx)
                shift = (-(dy * W + dx)) % HW
                t = pltpu.roll(h1, shift, 1) if shift else h1
                if dy != 0 and dx != 0:
                    msk = row_ok[dy] & col_ok[dx]
                elif dy != 0:
                    msk = row_ok[dy]
                elif dx != 0:
                    msk = col_ok[dx]
                else:
                    msk = None                        # center tap always valid
                if msk is not None:
                    t = jnp.where(msk, t, 0.0)
                acc2 = acc2 + t * dw[:, tap:tap + 1]
        h2 = _relu6(acc2 + b2)                        # (M, HW)

        # --- stage 3: 1x1 conv M->C (+BN) + ReLU6 ------------------------------
        acc3 = jnp.zeros((C, HW), jnp.float32)
        for m in range(M):
            acc3 = acc3 + h2[m:m + 1, :] * w3[:, m:m + 1]
        h3 = _relu6(acc3 + b3)                        # (C, HW)

        # --- stage 4: 1x1 conv C->C (+BN), no ReLU -----------------------------
        acc4 = jnp.zeros((C, HW), jnp.float32)
        for c in range(C):
            acc4 = acc4 + h3[c:c + 1, :] * w4[:, c:c + 1]

        outs.append(acc4 + b4 + xb)                   # residual add

    # Single lane-dense, full-vreg store: (N*C, HW) = (8, 256) here.
    out = outs[0] if N == 1 else jnp.concatenate(outs, axis=0)
    o_ref[...] = out.astype(o_ref.dtype)


def fold_params(p):
    """Fold BN scales into the conv weights and pack all parameters into a single
    small (max(M,C), 2*C + M + 13) f32 slab (one VMEM tile -> one DMA)."""
    C, M = p["w1"].shape
    R = max(M, C)
    w1f = (p["w1"] * p["s1"]).T          # (M, C)
    dwf = (p["dw"] * p["s2"]).T          # (M, 9)
    w3f = (p["w3"] * p["s3"]).T          # (C, M)
    w4f = (p["w4"] * p["s4"]).T          # (C, C)
    pieces = [w1f, dwf, w3f, w4f, p["b1"].T, p["b2"].T, p["b3"].T, p["b4"].T]
    pieces = [jnp.pad(a, ((0, R - a.shape[0]), (0, 0))) for a in pieces]
    return jnp.concatenate(pieces, axis=1).astype(jnp.float32)


def residual_block(x_nchw, p):
    """x_nchw: (N, C, H, W) float32. Returns (N, C, H, W)."""
    N, C, H, W = x_nchw.shape
    M = p["w1"].shape[1]
    HW = H * W

    # NCHW -> (N*C, HW): pure reshape (no transpose); batch fused into the sublane
    # axis so the whole block runs as one grid-free kernel invocation.
    # (If N grows large on v7x, reintroduce a parallel batch grid axis and pack
    #  2 images per step -- decide by measurement.)
    x_flat = x_nchw.reshape(N * C, HW)
    wpack = fold_params(p)

    out = pl.pallas_call(
        functools.partial(residual_block_kernel, N=N, C=C, M=M, H=H, W=W),
        out_shape=jax.ShapeDtypeStruct((N * C, HW), x_nchw.dtype),
        # Output reuses x's HBM buffer (same shape/dtype): no extra HBM allocation.
        input_output_aliases={0: 0},
    )(x_flat, wpack)
    return out.reshape(N, C, H, W)


def make_params(C, M, key):
    """Deterministic synthetic params; BN represented as per-channel (scale, bias)."""
    k1, k2, k3, k4 = jax.random.split(key, 4)
    eps = 1e-5

    def bn_fold(ch, salt):
        r = jnp.arange(ch, dtype=jnp.float32)
        gamma = 1.0 + 0.1 * (r + salt) / (ch + salt)
        beta = 0.05 * r - 0.1
        mean = 0.02 * r - 0.05
        var = 1.0 + 0.1 * r
        s = gamma / jnp.sqrt(var + eps)
        b = beta - mean * s
        return s.reshape(1, ch), b.reshape(1, ch)

    s1, b1 = bn_fold(M, 1)
    s2, b2 = bn_fold(M, 2)
    s3, b3 = bn_fold(C, 3)
    s4, b4 = bn_fold(C, 4)
    return dict(
        w1=0.5 * jax.random.normal(k1, (C, M), jnp.float32),   # 1x1: (Cin, Cout)
        dw=0.5 * jax.random.normal(k2, (9, M), jnp.float32),   # 3x3 dw taps row-major
        w3=0.5 * jax.random.normal(k3, (M, C), jnp.float32),
        w4=0.5 * jax.random.normal(k4, (C, C), jnp.float32),
        s1=s1, b1=b1, s2=s2, b2=b2, s3=s3, b3=b3, s4=s4, b4=b4,
    )


def reference_nchw(x_nchw, p):
    """Pure-JAX reference (unfolded params) for numerical check; NCHW in/out."""
    relu6 = lambda v: jnp.clip(v, 0.0, 6.0)
    M = p["w1"].shape[1]
    x = jnp.transpose(x_nchw, (0, 2, 3, 1))                    # NHWC
    h1 = relu6(jnp.einsum("nhwc,cm->nhwm", x, p["w1"]) * p["s1"][0] + p["b1"][0])
    dw_k = p["dw"].reshape(3, 3, 1, M)
    h2 = lax.conv_general_dilated(
        h1, dw_k, window_strides=(1, 1), padding="SAME",
        dimension_numbers=("NHWC", "HWIO", "NHWC"), feature_group_count=M)
    h2 = relu6(h2 * p["s2"][0] + p["b2"][0])
    h3 = relu6(jnp.einsum("nhwm,mc->nhwc", h2, p["w3"]) * p["s3"][0] + p["b3"][0])
    h4 = jnp.einsum("nhwc,cd->nhwd", h3, p["w4"]) * p["s4"][0] + p["b4"][0]
    out = h4 + x
    return jnp.transpose(out, (0, 3, 1, 2))                    # back to NCHW


if __name__ == "__main__":
    N, C, H, W = 2, 4, 16, 16     # inout_channels = 4
    M = 8                         # mid_channels = 8

    key = jax.random.PRNGKey(0)
    kx, kp = jax.random.split(key)
    x_nchw = jax.random.normal(kx, (N, C, H, W), jnp.float32)   # PyTorch layout
    params = make_params(C, M, kp)

    residual_block_jit = jax.jit(residual_block)
    out = jax.block_until_ready(residual_block_jit(x_nchw, params))

    ref = jax.block_until_ready(reference_nchw(x_nchw, params))
    assert out.shape == (N, C, H, W)
    assert jnp.allclose(out, ref, atol=2e-4, rtol=2e-4), "mismatch vs JAX reference"

    print("KERNEL_OK")
</pallas_src>

<mosaic_0001>
module attributes {stable_mosaic.version = 11 : i64} {
  func.func @residual_block_kernel(%arg0: memref<8x256xf32, #tpu.memory_space<vmem>>, %arg1: memref<8x29xf32, #tpu.memory_space<vmem>>, %arg2: memref<8x256xf32, #tpu.memory_space<vmem>>) attributes {dimension_semantics = [], scalar_prefetch = 0 : i64, scratch_operands = 0 : i64, tpu.core_type = #tpu.core_type<tc>} {
    %c0 = arith.constant 0 : index
    %c0_0 = arith.constant 0 : index
    %0 = vector.load %arg0[%c0, %c0_0] : memref<8x256xf32, #tpu.memory_space<vmem>>, vector<8x256xf32>
    %c0_1 = arith.constant 0 : index
    %c0_2 = arith.constant 0 : index
    %1 = vector.load %arg1[%c0_1, %c0_2] : memref<8x29xf32, #tpu.memory_space<vmem>>, vector<8x29xf32>
    %2 = vector.extract_strided_slice %1 {offsets = [0, 0], sizes = [8, 4], strides = [1, 1]} : vector<8x29xf32> to vector<8x4xf32>
    %3 = vector.extract_strided_slice %1 {offsets = [0, 4], sizes = [8, 9], strides = [1, 1]} : vector<8x29xf32> to vector<8x9xf32>
    %4 = vector.extract_strided_slice %1 {offsets = [0, 13], sizes = [4, 8], strides = [1, 1]} : vector<8x29xf32> to vector<4x8xf32>
    %5 = vector.extract_strided_slice %1 {offsets = [0, 21], sizes = [4, 4], strides = [1, 1]} : vector<8x29xf32> to vector<4x4xf32>
    %6 = vector.extract_strided_slice %1 {offsets = [0, 25], sizes = [8, 1], strides = [1, 1]} : vector<8x29xf32> to vector<8x1xf32>
    %7 = vector.extract_strided_slice %1 {offsets = [0, 26], sizes = [8, 1], strides = [1, 1]} : vector<8x29xf32> to vector<8x1xf32>
    %8 = vector.extract_strided_slice %1 {offsets = [0, 27], sizes = [4, 1], strides = [1, 1]} : vector<8x29xf32> to vector<4x1xf32>
    %9 = vector.extract_strided_slice %1 {offsets = [0, 28], sizes = [4, 1], strides = [1, 1]} : vector<8x29xf32> to vector<4x1xf32>
    %10 = tpu.iota {dimensions = array<i32: 1>} : vector<1x256xi32>
    %c4_i32 = arith.constant 4 : i32
    %11 = vector.broadcast %c4_i32 : i32 to vector<1x256xi32>
    %12 = arith.shrsi %10, %11 : vector<1x256xi32>
    %c15_i32 = arith.constant 15 : i32
    %13 = vector.broadcast %c15_i32 : i32 to vector<1x256xi32>
    %14 = arith.andi %10, %13 : vector<1x256xi32>
    %c1_i32 = arith.constant 1 : i32
    %15 = vector.broadcast %c1_i32 : i32 to vector<1x256xi32>
    %16 = arith.cmpi sge, %12, %15 : vector<1x256xi32>
    %c14_i32 = arith.constant 14 : i32
    %17 = vector.broadcast %c14_i32 : i32 to vector<1x256xi32>
    %18 = arith.cmpi sle, %12, %17 : vector<1x256xi32>
    %c1_i32_3 = arith.constant 1 : i32
    %19 = vector.broadcast %c1_i32_3 : i32 to vector<1x256xi32>
    %20 = arith.cmpi sge, %14, %19 : vector<1x256xi32>
    %c14_i32_4 = arith.constant 14 : i32
    %21 = vector.broadcast %c14_i32_4 : i32 to vector<1x256xi32>
    %22 = arith.cmpi sle, %14, %21 : vector<1x256xi32>
    %23 = vector.extract_strided_slice %0 {offsets = [0, 0], sizes = [4, 256], strides = [1, 1]} : vector<8x256xf32> to vector<4x256xf32>
    %cst = arith.constant 0.000000e+00 : f32
    %24 = vector.broadcast %cst : f32 to vector<8x256xf32>
    %25 = vector.extract_strided_slice %23 {offsets = [0, 0], sizes = [1, 256], strides = [1, 1]} : vector<4x256xf32> to vector<1x256xf32>
    %26 = vector.extract_strided_slice %2 {offsets = [0, 0], sizes = [8, 1], strides = [1, 1]} : vector<8x4xf32> to vector<8x1xf32>
    %27 = vector.broadcast %25 : vector<1x256xf32> to vector<8x256xf32>
    %28 = vector.broadcast %26 : vector<8x1xf32> to vector<8x256xf32>
    %29 = arith.mulf %27, %28 : vector<8x256xf32>
    %30 = arith.addf %24, %29 : vector<8x256xf32>
    %31 = vector.extract_strided_slice %23 {offsets = [1, 0], sizes = [1, 256], strides = [1, 1]} : vector<4x256xf32> to vector<1x256xf32>
    %32 = vector.extract_strided_slice %2 {offsets = [0, 1], sizes = [8, 1], strides = [1, 1]} : vector<8x4xf32> to vector<8x1xf32>
    %33 = vector.broadcast %31 : vector<1x256xf32> to vector<8x256xf32>
    %34 = vector.broadcast %32 : vector<8x1xf32> to vector<8x256xf32>
    %35 = arith.mulf %33, %34 : vector<8x256xf32>
    %36 = arith.addf %30, %35 : vector<8x256xf32>
    %37 = vector.extract_strided_slice %23 {offsets = [2, 0], sizes = [1, 256], strides = [1, 1]} : vector<4x256xf32> to vector<1x256xf32>
    %38 = vector.extract_strided_slice %2 {offsets = [0, 2], sizes = [8, 1], strides = [1, 1]} : vector<8x4xf32> to vector<8x1xf32>
    %39 = vector.broadcast %37 : vector<1x256xf32> to vector<8x256xf32>
    %40 = vector.broadcast %38 : vector<8x1xf32> to vector<8x256xf32>
    %41 = arith.mulf %39, %40 : vector<8x256xf32>
    %42 = arith.addf %36, %41 : vector<8x256xf32>
    %43 = vector.extract_strided_slice %23 {offsets = [3, 0], sizes = [1, 256], strides = [1, 1]} : vector<4x256xf32> to vector<1x256xf32>
    %44 = vector.extract_strided_slice %2 {offsets = [0, 3], sizes = [8, 1], strides = [1, 1]} : vector<8x4xf32> to vector<8x1xf32>
    %45 = vector.broadcast %43 : vector<1x256xf32> to vector<8x256xf32>
    %46 = vector.broadcast %44 : vector<8x1xf32> to vector<8x256xf32>
    %47 = arith.mulf %45, %46 : vector<8x256xf32>
    %48 = arith.addf %42, %47 : vector<8x256xf32>
    %49 = vector.broadcast %6 : vector<8x1xf32> to vector<8x256xf32>
    %50 = arith.addf %48, %49 : vector<8x256xf32>
    %cst_5 = arith.constant 0.000000e+00 : f32
    %51 = vector.broadcast %cst_5 : f32 to vector<8x256xf32>
    %52 = arith.maximumf %50, %51 : vector<8x256xf32>
    %cst_6 = arith.constant 6.000000e+00 : f32
    %53 = vector.broadcast %cst_6 : f32 to vector<8x256xf32>
    %54 = arith.minimumf %52, %53 : vector<8x256xf32>
    %cst_7 = arith.constant 0.000000e+00 : f32
    %55 = vector.broadcast %cst_7 : f32 to vector<8x256xf32>
    %c17_i32 = arith.constant 17 : i32
    %56 = tpu.dynamic_rotate %54 by %c17_i32 dim 1 : vector<8x256xf32>, i32 -> vector<8x256xf32>
    %57 = arith.andi %16, %20 : vector<1x256xi1>
    %cst_8 = arith.constant 0.000000e+00 : f32
    %58 = vector.shape_cast %57 : vector<1x256xi1> to vector<1x256xi1>
    %59 = vector.broadcast %58 : vector<1x256xi1> to vector<8x256xi1>
    %60 = vector.broadcast %cst_8 : f32 to vector<8x256xf32>
    %61 = arith.select %59, %56, %60 : vector<8x256xi1>, vector<8x256xf32>
    %62 = vector.extract_strided_slice %3 {offsets = [0, 0], sizes = [8, 1], strides = [1, 1]} : vector<8x9xf32> to vector<8x1xf32>
    %63 = vector.broadcast %62 : vector<8x1xf32> to vector<8x256xf32>
    %64 = arith.mulf %61, %63 : vector<8x256xf32>
    %65 = arith.addf %55, %64 : vector<8x256xf32>
    %c16_i32 = arith.constant 16 : i32
    %66 = tpu.dynamic_rotate %54 by %c16_i32 dim 1 : vector<8x256xf32>, i32 -> vector<8x256xf32>
    %cst_9 = arith.constant 0.000000e+00 : f32
    %67 = vector.shape_cast %16 : vector<1x256xi1> to vector<1x256xi1>
    %68 = vector.broadcast %67 : vector<1x256xi1> to vector<8x256xi1>
    %69 = vector.broadcast %cst_9 : f32 to vector<8x256xf32>
    %70 = arith.select %68, %66, %69 : vector<8x256xi1>, vector<8x256xf32>
    %71 = vector.extract_strided_slice %3 {offsets = [0, 1], sizes = [8, 1], strides = [1, 1]} : vector<8x9xf32> to vector<8x1xf32>
    %72 = vector.broadcast %71 : vector<8x1xf32> to vector<8x256xf32>
    %73 = arith.mulf %70, %72 : vector<8x256xf32>
    %74 = arith.addf %65, %73 : vector<8x256xf32>
    %c15_i32_10 = arith.constant 15 : i32
    %75 = tpu.dynamic_rotate %54 by %c15_i32_10 dim 1 : vector<8x256xf32>, i32 -> vector<8x256xf32>
    %76 = arith.andi %16, %22 : vector<1x256xi1>
    %cst_11 = arith.constant 0.000000e+00 : f32
    %77 = vector.shape_cast %76 : vector<1x256xi1> to vector<1x256xi1>
    %78 = vector.broadcast %77 : vector<1x256xi1> to vector<8x256xi1>
    %79 = vector.broadcast %cst_11 : f32 to vector<8x256xf32>
    %80 = arith.select %78, %75, %79 : vector<8x256xi1>, vector<8x256xf32>
    %81 = vector.extract_strided_slice %3 {offsets = [0, 2], sizes = [8, 1], strides = [1, 1]} : vector<8x9xf32> to vector<8x1xf32>
    %82 = vector.broadcast %81 : vector<8x1xf32> to vector<8x256xf32>
    %83 = arith.mulf %80, %82 : vector<8x256xf32>
    %84 = arith.addf %74, %83 : vector<8x256xf32>
    %c1_i32_12 = arith.constant 1 : i32
    %85 = tpu.dynamic_rotate %54 by %c1_i32_12 dim 1 : vector<8x256xf32>, i32 -> vector<8x256xf32>
    %cst_13 = arith.constant 0.000000e+00 : f32
    %86 = vector.shape_cast %20 : vector<1x256xi1> to vector<1x256xi1>
    %87 = vector.broadcast %86 : vector<1x256xi1> to vector<8x256xi1>
    %88 = vector.broadcast %cst_13 : f32 to vector<8x256xf32>
    %89 = arith.select %87, %85, %88 : vector<8x256xi1>, vector<8x256xf32>
    %90 = vector.extract_strided_slice %3 {offsets = [0, 3], sizes = [8, 1], strides = [1, 1]} : vector<8x9xf32> to vector<8x1xf32>
    %91 = vector.broadcast %90 : vector<8x1xf32> to vector<8x256xf32>
    %92 = arith.mulf %89, %91 : vector<8x256xf32>
    %93 = arith.addf %84, %92 : vector<8x256xf32>
    %94 = vector.extract_strided_slice %3 {offsets = [0, 4], sizes = [8, 1], strides = [1, 1]} : vector<8x9xf32> to vector<8x1xf32>
    %95 = vector.broadcast %94 : vector<8x1xf32> to vector<8x256xf32>
    %96 = arith.mulf %54, %95 : vector<8x256xf32>
    %97 = arith.addf %93, %96 : vector<8x256xf32>
    %c255_i32 = arith.constant 255 : i32
    %98 = tpu.dynamic_rotate %54 by %c255_i32 dim 1 : vector<8x256xf32>, i32 -> vector<8x256xf32>
    %cst_14 = arith.constant 0.000000e+00 : f32
    %99 = vector.shape_cast %22 : vector<1x256xi1> to vector<1x256xi1>
    %100 = vector.broadcast %99 : vector<1x256xi1> to vector<8x256xi1>
    %101 = vector.broadcast %cst_14 : f32 to vector<8x256xf32>
    %102 = arith.select %100, %98, %101 : vector<8x256xi1>, vector<8x256xf32>
    %103 = vector.extract_strided_slice %3 {offsets = [0, 5], sizes = [8, 1], strides = [1, 1]} : vector<8x9xf32> to vector<8x1xf32>
    %104 = vector.broadcast %103 : vector<8x1xf32> to vector<8x256xf32>
    %105 = arith.mulf %102, %104 : vector<8x256xf32>
    %106 = arith.addf %97, %105 : vector<8x256xf32>
    %c241_i32 = arith.constant 241 : i32
    %107 = tpu.dynamic_rotate %54 by %c241_i32 dim 1 : vector<8x256xf32>, i32 -> vector<8x256xf32>
    %108 = arith.andi %18, %20 : vector<1x256xi1>
    %cst_15 = arith.constant 0.000000e+00 : f32
    %109 = vector.shape_cast %108 : vector<1x256xi1> to vector<1x256xi1>
    %110 = vector.broadcast %109 : vector<1x256xi1> to vector<8x256xi1>
    %111 = vector.broadcast %cst_15 : f32 to vector<8x256xf32>
    %112 = arith.select %110, %107, %111 : vector<8x256xi1>, vector<8x256xf32>
    %113 = vector.extract_strided_slice %3 {offsets = [0, 6], sizes = [8, 1], strides = [1, 1]} : vector<8x9xf32> to vector<8x1xf32>
    %114 = vector.broadcast %113 : vector<8x1xf32> to vector<8x256xf32>
    %115 = arith.mulf %112, %114 : vector<8x256xf32>
    %116 = arith.addf %106, %115 : vector<8x256xf32>
    %c240_i32 = arith.constant 240 : i32
    %117 = tpu.dynamic_rotate %54 by %c240_i32 dim 1 : vector<8x256xf32>, i32 -> vector<8x256xf32>
    %cst_16 = arith.constant 0.000000e+00 : f32
    %118 = vector.shape_cast %18 : vector<1x256xi1> to vector<1x256xi1>
    %119 = vector.broadcast %118 : vector<1x256xi1> to vector<8x256xi1>
    %120 = vector.broadcast %cst_16 : f32 to vector<8x256xf32>
    %121 = arith.select %119, %117, %120 : vector<8x256xi1>, vector<8x256xf32>
    %122 = vector.extract_strided_slice %3 {offsets = [0, 7], sizes = [8, 1], strides = [1, 1]} : vector<8x9xf32> to vector<8x1xf32>
    %123 = vector.broadcast %122 : vector<8x1xf32> to vector<8x256xf32>
    %124 = arith.mulf %121, %123 : vector<8x256xf32>
    %125 = arith.addf %116, %124 : vector<8x256xf32>
    %c239_i32 = arith.constant 239 : i32
    %126 = tpu.dynamic_rotate %54 by %c239_i32 dim 1 : vector<8x256xf32>, i32 -> vector<8x256xf32>
    %127 = arith.andi %18, %22 : vector<1x256xi1>
    %cst_17 = arith.constant 0.000000e+00 : f32
    %128 = vector.shape_cast %127 : vector<1x256xi1> to vector<1x256xi1>
    %129 = vector.broadcast %128 : vector<1x256xi1> to vector<8x256xi1>
    %130 = vector.broadcast %cst_17 : f32 to vector<8x256xf32>
    %131 = arith.select %129, %126, %130 : vector<8x256xi1>, vector<8x256xf32>
    %132 = vector.extract_strided_slice %3 {offsets = [0, 8], sizes = [8, 1], strides = [1, 1]} : vector<8x9xf32> to vector<8x1xf32>
    %133 = vector.broadcast %132 : vector<8x1xf32> to vector<8x256xf32>
    %134 = arith.mulf %131, %133 : vector<8x256xf32>
    %135 = arith.addf %125, %134 : vector<8x256xf32>
    %136 = vector.broadcast %7 : vector<8x1xf32> to vector<8x256xf32>
    %137 = arith.addf %135, %136 : vector<8x256xf32>
    %cst_18 = arith.constant 0.000000e+00 : f32
    %138 = vector.broadcast %cst_18 : f32 to vector<8x256xf32>
    %139 = arith.maximumf %137, %138 : vector<8x256xf32>
    %cst_19 = arith.constant 6.000000e+00 : f32
    %140 = vector.broadcast %cst_19 : f32 to vector<8x256xf32>
    %141 = arith.minimumf %139, %140 : vector<8x256xf32>
    %cst_20 = arith.constant 0.000000e+00 : f32
    %142 = vector.broadcast %cst_20 : f32 to vector<4x256xf32>
    %143 = vector.extract_strided_slice %141 {offsets = [0, 0], sizes = [1, 256], strides = [1, 1]} : vector<8x256xf32> to vector<1x256xf32>
    %144 = vector.extract_strided_slice %4 {offsets = [0, 0], sizes = [4, 1], strides = [1, 1]} : vector<4x8xf32> to vector<4x1xf32>
    %145 = vector.broadcast %143 : vector<1x256xf32> to vector<4x256xf32>
    %146 = vector.broadcast %144 : vector<4x1xf32> to vector<4x256xf32>
    %147 = arith.mulf %145, %146 : vector<4x256xf32>
    %148 = arith.addf %142, %147 : vector<4x256xf32>
    %149 = vector.extract_strided_slice %141 {offsets = [1, 0], sizes = [1, 256], strides = [1, 1]} : vector<8x256xf32> to vector<1x256xf32>
    %150 = vector.extract_strided_slice %4 {offsets = [0, 1], sizes = [4, 1], strides = [1, 1]} : vector<4x8xf32> to vector<4x1xf32>
    %151 = vector.broadcast %149 : vector<1x256xf32> to vector<4x256xf32>
    %152 = vector.broadcast %150 : vector<4x1xf32> to vector<4x256xf32>
    %153 = arith.mulf %151, %152 : vector<4x256xf32>
    %154 = arith.addf %148, %153 : vector<4x256xf32>
    %155 = vector.extract_strided_slice %141 {offsets = [2, 0], sizes = [1, 256], strides = [1, 1]} : vector<8x256xf32> to vector<1x256xf32>
    %156 = vector.extract_strided_slice %4 {offsets = [0, 2], sizes = [4, 1], strides = [1, 1]} : vector<4x8xf32> to vector<4x1xf32>
    %157 = vector.broadcast %155 : vector<1x256xf32> to vector<4x256xf32>
    %158 = vector.broadcast %156 : vector<4x1xf32> to vector<4x256xf32>
    %159 = arith.mulf %157, %158 : vector<4x256xf32>
    %160 = arith.addf %154, %159 : vector<4x256xf32>
    %161 = vector.extract_strided_slice %141 {offsets = [3, 0], sizes = [1, 256], strides = [1, 1]} : vector<8x256xf32> to vector<1x256xf32>
    %162 = vector.extract_strided_slice %4 {offsets = [0, 3], sizes = [4, 1], strides = [1, 1]} : vector<4x8xf32> to vector<4x1xf32>
    %163 = vector.broadcast %161 : vector<1x256xf32> to vector<4x256xf32>
    %164 = vector.broadcast %162 : vector<4x1xf32> to vector<4x256xf32>
    %165 = arith.mulf %163, %164 : vector<4x256xf32>
    %166 = arith.addf %160, %165 : vector<4x256xf32>
    %167 = vector.extract_strided_slice %141 {offsets = [4, 0], sizes = [1, 256], strides = [1, 1]} : vector<8x256xf32> to vector<1x256xf32>
    %168 = vector.extract_strided_slice %4 {offsets = [0, 4], sizes = [4, 1], strides = [1, 1]} : vector<4x8xf32> to vector<4x1xf32>
    %169 = vector.broadcast %167 : vector<1x256xf32> to vector<4x256xf32>
    %170 = vector.broadcast %168 : vector<4x1xf32> to vector<4x256xf32>
    %171 = arith.mulf %169, %170 : vector<4x256xf32>
    %172 = arith.addf %166, %171 : vector<4x256xf32>
    %173 = vector.extract_strided_slice %141 {offsets = [5, 0], sizes = [1, 256], strides = [1, 1]} : vector<8x256xf32> to vector<1x256xf32>
    %174 = vector.extract_strided_slice %4 {offsets = [0, 5], sizes = [4, 1], strides = [1, 1]} : vector<4x8xf32> to vector<4x1xf32>
    %175 = vector.broadcast %173 : vector<1x256xf32> to vector<4x256xf32>
    %176 = vector.broadcast %174 : vector<4x1xf32> to vector<4x256xf32>
    %177 = arith.mulf %175, %176 : vector<4x256xf32>
    %178 = arith.addf %172, %177 : vector<4x256xf32>
    %179 = vector.extract_strided_slice %141 {offsets = [6, 0], sizes = [1, 256], strides = [1, 1]} : vector<8x256xf32> to vector<1x256xf32>
    %180 = vector.extract_strided_slice %4 {offsets = [0, 6], sizes = [4, 1], strides = [1, 1]} : vector<4x8xf32> to vector<4x1xf32>
    %181 = vector.broadcast %179 : vector<1x256xf32> to vector<4x256xf32>
    %182 = vector.broadcast %180 : vector<4x1xf32> to vector<4x256xf32>
    %183 = arith.mulf %181, %182 : vector<4x256xf32>
    %184 = arith.addf %178, %183 : vector<4x256xf32>
    %185 = vector.extract_strided_slice %141 {offsets = [7, 0], sizes = [1, 256], strides = [1, 1]} : vector<8x256xf32> to vector<1x256xf32>
    %186 = vector.extract_strided_slice %4 {offsets = [0, 7], sizes = [4, 1], strides = [1, 1]} : vector<4x8xf32> to vector<4x1xf32>
    %187 = vector.broadcast %185 : vector<1x256xf32> to vector<4x256xf32>
    %188 = vector.broadcast %186 : vector<4x1xf32> to vector<4x256xf32>
    %189 = arith.mulf %187, %188 : vector<4x256xf32>
    %190 = arith.addf %184, %189 : vector<4x256xf32>
    %191 = vector.broadcast %8 : vector<4x1xf32> to vector<4x256xf32>
    %192 = arith.addf %190, %191 : vector<4x256xf32>
    %cst_21 = arith.constant 0.000000e+00 : f32
    %193 = vector.broadcast %cst_21 : f32 to vector<4x256xf32>
    %194 = arith.maximumf %192, %193 : vector<4x256xf32>
    %cst_22 = arith.constant 6.000000e+00 : f32
    %195 = vector.broadcast %cst_22 : f32 to vector<4x256xf32>
    %196 = arith.minimumf %194, %195 : vector<4x256xf32>
    %cst_23 = arith.constant 0.000000e+00 : f32
    %197 = vector.broadcast %cst_23 : f32 to vector<4x256xf32>
    %198 = vector.extract_strided_slice %196 {offsets = [0, 0], sizes = [1, 256], strides = [1, 1]} : vector<4x256xf32> to vector<1x256xf32>
    %199 = vector.extract_strided_slice %5 {offsets = [0, 0], sizes = [4, 1], strides = [1, 1]} : vector<4x4xf32> to vector<4x1xf32>
    %200 = vector.broadcast %198 : vector<1x256xf32> to vector<4x256xf32>
    %201 = vector.broadcast %199 : vector<4x1xf32> to vector<4x256xf32>
    %202 = arith.mulf %200, %201 : vector<4x256xf32>
    %203 = arith.addf %197, %202 : vector<4x256xf32>
    %204 = vector.extract_strided_slice %196 {offsets = [1, 0], sizes = [1, 256], strides = [1, 1]} : vector<4x256xf32> to vector<1x256xf32>
    %205 = vector.extract_strided_slice %5 {offsets = [0, 1], sizes = [4, 1], strides = [1, 1]} : vector<4x4xf32> to vector<4x1xf32>
    %206 = vector.broadcast %204 : vector<1x256xf32> to vector<4x256xf32>
    %207 = vector.broadcast %205 : vector<4x1xf32> to vector<4x256xf32>
    %208 = arith.mulf %206, %207 : vector<4x256xf32>
    %209 = arith.addf %203, %208 : vector<4x256xf32>
    %210 = vector.extract_strided_slice %196 {offsets = [2, 0], sizes = [1, 256], strides = [1, 1]} : vector<4x256xf32> to vector<1x256xf32>
    %211 = vector.extract_strided_slice %5 {offsets = [0, 2], sizes = [4, 1], strides = [1, 1]} : vector<4x4xf32> to vector<4x1xf32>
    %212 = vector.broadcast %210 : vector<1x256xf32> to vector<4x256xf32>
    %213 = vector.broadcast %211 : vector<4x1xf32> to vector<4x256xf32>
    %214 = arith.mulf %212, %213 : vector<4x256xf32>
    %215 = arith.addf %209, %214 : vector<4x256xf32>
    %216 = vector.extract_strided_slice %196 {offsets = [3, 0], sizes = [1, 256], strides = [1, 1]} : vector<4x256xf32> to vector<1x256xf32>
    %217 = vector.extract_strided_slice %5 {offsets = [0, 3], sizes = [4, 1], strides = [1, 1]} : vector<4x4xf32> to vector<4x1xf32>
    %218 = vector.broadcast %216 : vector<1x256xf32> to vector<4x256xf32>
    %219 = vector.broadcast %217 : vector<4x1xf32> to vector<4x256xf32>
    %220 = arith.mulf %218, %219 : vector<4x256xf32>
    %221 = arith.addf %215, %220 : vector<4x256xf32>
    %222 = vector.broadcast %9 : vector<4x1xf32> to vector<4x256xf32>
    %223 = arith.addf %221, %222 : vector<4x256xf32>
    %224 = arith.addf %223, %23 : vector<4x256xf32>
    %225 = vector.extract_strided_slice %0 {offsets = [4, 0], sizes = [4, 256], strides = [1, 1]} : vector<8x256xf32> to vector<4x256xf32>
    %cst_24 = arith.constant 0.000000e+00 : f32
    %226 = vector.broadcast %cst_24 : f32 to vector<8x256xf32>
    %227 = vector.extract_strided_slice %225 {offsets = [0, 0], sizes = [1, 256], strides = [1, 1]} : vector<4x256xf32> to vector<1x256xf32>
    %228 = vector.extract_strided_slice %2 {offsets = [0, 0], sizes = [8, 1], strides = [1, 1]} : vector<8x4xf32> to vector<8x1xf32>
    %229 = vector.broadcast %227 : vector<1x256xf32> to vector<8x256xf32>
    %230 = vector.broadcast %228 : vector<8x1xf32> to vector<8x256xf32>
    %231 = arith.mulf %229, %230 : vector<8x256xf32>
    %232 = arith.addf %226, %231 : vector<8x256xf32>
    %233 = vector.extract_strided_slice %225 {offsets = [1, 0], sizes = [1, 256], strides = [1, 1]} : vector<4x256xf32> to vector<1x256xf32>
    %234 = vector.extract_strided_slice %2 {offsets = [0, 1], sizes = [8, 1], strides = [1, 1]} : vector<8x4xf32> to vector<8x1xf32>
    %235 = vector.broadcast %233 : vector<1x256xf32> to vector<8x256xf32>
    %236 = vector.broadcast %234 : vector<8x1xf32> to vector<8x256xf32>
    %237 = arith.mulf %235, %236 : vector<8x256xf32>
    %238 = arith.addf %232, %237 : vector<8x256xf32>
    %239 = vector.extract_strided_slice %225 {offsets = [2, 0], sizes = [1, 256], strides = [1, 1]} : vector<4x256xf32> to vector<1x256xf32>
    %240 = vector.extract_strided_slice %2 {offsets = [0, 2], sizes = [8, 1], strides = [1, 1]} : vector<8x4xf32> to vector<8x1xf32>
    %241 = vector.broadcast %239 : vector<1x256xf32> to vector<8x256xf32>
    %242 = vector.broadcast %240 : vector<8x1xf32> to vector<8x256xf32>
    %243 = arith.mulf %241, %242 : vector<8x256xf32>
    %244 = arith.addf %238, %243 : vector<8x256xf32>
    %245 = vector.extract_strided_slice %225 {offsets = [3, 0], sizes = [1, 256], strides = [1, 1]} : vector<4x256xf32> to vector<1x256xf32>
    %246 = vector.extract_strided_slice %2 {offsets = [0, 3], sizes = [8, 1], strides = [1, 1]} : vector<8x4xf32> to vector<8x1xf32>
    %247 = vector.broadcast %245 : vector<1x256xf32> to vector<8x256xf32>
    %248 = vector.broadcast %246 : vector<8x1xf32> to vector<8x256xf32>
    %249 = arith.mulf %247, %248 : vector<8x256xf32>
    %250 = arith.addf %244, %249 : vector<8x256xf32>
    %251 = vector.broadcast %6 : vector<8x1xf32> to vector<8x256xf32>
    %252 = arith.addf %250, %251 : vector<8x256xf32>
    %cst_25 = arith.constant 0.000000e+00 : f32
    %253 = vector.broadcast %cst_25 : f32 to vector<8x256xf32>
    %254 = arith.maximumf %252, %253 : vector<8x256xf32>
    %cst_26 = arith.constant 6.000000e+00 : f32
    %255 = vector.broadcast %cst_26 : f32 to vector<8x256xf32>
    %256 = arith.minimumf %254, %255 : vector<8x256xf32>
    %cst_27 = arith.constant 0.000000e+00 : f32
    %257 = vector.broadcast %cst_27 : f32 to vector<8x256xf32>
    %c17_i32_28 = arith.constant 17 : i32
    %258 = tpu.dynamic_rotate %256 by %c17_i32_28 dim 1 : vector<8x256xf32>, i32 -> vector<8x256xf32>
    %259 = arith.andi %16, %20 : vector<1x256xi1>
    %cst_29 = arith.constant 0.000000e+00 : f32
    %260 = vector.shape_cast %259 : vector<1x256xi1> to vector<1x256xi1>
    %261 = vector.broadcast %260 : vector<1x256xi1> to vector<8x256xi1>
    %262 = vector.broadcast %cst_29 : f32 to vector<8x256xf32>
    %263 = arith.select %261, %258, %262 : vector<8x256xi1>, vector<8x256xf32>
    %264 = vector.extract_strided_slice %3 {offsets = [0, 0], sizes = [8, 1], strides = [1, 1]} : vector<8x9xf32> to vector<8x1xf32>
    %265 = vector.broadcast %264 : vector<8x1xf32> to vector<8x256xf32>
    %266 = arith.mulf %263, %265 : vector<8x256xf32>
    %267 = arith.addf %257, %266 : vector<8x256xf32>
    %c16_i32_30 = arith.constant 16 : i32
    %268 = tpu.dynamic_rotate %256 by %c16_i32_30 dim 1 : vector<8x256xf32>, i32 -> vector<8x256xf32>
    %cst_31 = arith.constant 0.000000e+00 : f32
    %269 = vector.shape_cast %16 : vector<1x256xi1> to vector<1x256xi1>
    %270 = vector.broadcast %269 : vector<1x256xi1> to vector<8x256xi1>
    %271 = vector.broadcast %cst_31 : f32 to vector<8x256xf32>
    %272 = arith.select %270, %268, %271 : vector<8x256xi1>, vector<8x256xf32>
    %273 = vector.extract_strided_slice %3 {offsets = [0, 1], sizes = [8, 1], strides = [1, 1]} : vector<8x9xf32> to vector<8x1xf32>
    %274 = vector.broadcast %273 : vector<8x1xf32> to vector<8x256xf32>
    %275 = arith.mulf %272, %274 : vector<8x256xf32>
    %276 = arith.addf %267, %275 : vector<8x256xf32>
    %c15_i32_32 = arith.constant 15 : i32
    %277 = tpu.dynamic_rotate %256 by %c15_i32_32 dim 1 : vector<8x256xf32>, i32 -> vector<8x256xf32>
    %278 = arith.andi %16, %22 : vector<1x256xi1>
    %cst_33 = arith.constant 0.000000e+00 : f32
    %279 = vector.shape_cast %278 : vector<1x256xi1> to vector<1x256xi1>
    %280 = vector.broadcast %279 : vector<1x256xi1> to vector<8x256xi1>
    %281 = vector.broadcast %cst_33 : f32 to vector<8x256xf32>
    %282 = arith.select %280, %277, %281 : vector<8x256xi1>, vector<8x256xf32>
    %283 = vector.extract_strided_slice %3 {offsets = [0, 2], sizes = [8, 1], strides = [1, 1]} : vector<8x9xf32> to vector<8x1xf32>
    %284 = vector.broadcast %283 : vector<8x1xf32> to vector<8x256xf32>
    %285 = arith.mulf %282, %284 : vector<8x256xf32>
    %286 = arith.addf %276, %285 : vector<8x256xf32>
    %c1_i32_34 = arith.constant 1 : i32
    %287 = tpu.dynamic_rotate %256 by %c1_i32_34 dim 1 : vector<8x256xf32>, i32 -> vector<8x256xf32>
    %cst_35 = arith.constant 0.000000e+00 : f32
    %288 = vector.shape_cast %20 : vector<1x256xi1> to vector<1x256xi1>
    %289 = vector.broadcast %288 : vector<1x256xi1> to vector<8x256xi1>
    %290 = vector.broadcast %cst_35 : f32 to vector<8x256xf32>
    %291 = arith.select %289, %287, %290 : vector<8x256xi1>, vector<8x256xf32>
    %292 = vector.extract_strided_slice %3 {offsets = [0, 3], sizes = [8, 1], strides = [1, 1]} : vector<8x9xf32> to vector<8x1xf32>
    %293 = vector.broadcast %292 : vector<8x1xf32> to vector<8x256xf32>
    %294 = arith.mulf %291, %293 : vector<8x256xf32>
    %295 = arith.addf %286, %294 : vector<8x256xf32>
    %296 = vector.extract_strided_slice %3 {offsets = [0, 4], sizes = [8, 1], strides = [1, 1]} : vector<8x9xf32> to vector<8x1xf32>
    %297 = vector.broadcast %296 : vector<8x1xf32> to vector<8x256xf32>
    %298 = arith.mulf %256, %297 : vector<8x256xf32>
    %299 = arith.addf %295, %298 : vector<8x256xf32>
    %c255_i32_36 = arith.constant 255 : i32
    %300 = tpu.dynamic_rotate %256 by %c255_i32_36 dim 1 : vector<8x256xf32>, i32 -> vector<8x256xf32>
    %cst_37 = arith.constant 0.000000e+00 : f32
    %301 = vector.shape_cast %22 : vector<1x256xi1> to vector<1x256xi1>
    %302 = vector.broadcast %301 : vector<1x256xi1> to vector<8x256xi1>
    %303 = vector.broadcast %cst_37 : f32 to vector<8x256xf32>
    %304 = arith.select %302, %300, %303 : vector<8x256xi1>, vector<8x256xf32>
    %305 = vector.extract_strided_slice %3 {offsets = [0, 5], sizes = [8, 1], strides = [1, 1]} : vector<8x9xf32> to vector<8x1xf32>
    %306 = vector.broadcast %305 : vector<8x1xf32> to vector<8x256xf32>
    %307 = arith.mulf %304, %306 : vector<8x256xf32>
    %308 = arith.addf %299, %307 : vector<8x256xf32>
    %c241_i32_38 = arith.constant 241 : i32
    %309 = tpu.dynamic_rotate %256 by %c241_i32_38 dim 1 : vector<8x256xf32>, i32 -> vector<8x256xf32>
    %310 = arith.andi %18, %20 : vector<1x256xi1>
    %cst_39 = arith.constant 0.000000e+00 : f32
    %311 = vector.shape_cast %310 : vector<1x256xi1> to vector<1x256xi1>
    %312 = vector.broadcast %311 : vector<1x256xi1> to vector<8x256xi1>
    %313 = vector.broadcast %cst_39 : f32 to vector<8x256xf32>
    %314 = arith.select %312, %309, %313 : vector<8x256xi1>, vector<8x256xf32>
    %315 = vector.extract_strided_slice %3 {offsets = [0, 6], sizes = [8, 1], strides = [1, 1]} : vector<8x9xf32> to vector<8x1xf32>
    %316 = vector.broadcast %315 : vector<8x1xf32> to vector<8x256xf32>
    %317 = arith.mulf %314, %316 : vector<8x256xf32>
    %318 = arith.addf %308, %317 : vector<8x256xf32>
    %c240_i32_40 = arith.constant 240 : i32
    %319 = tpu.dynamic_rotate %256 by %c240_i32_40 dim 1 : vector<8x256xf32>, i32 -> vector<8x256xf32>
    %cst_41 = arith.constant 0.000000e+00 : f32
    %320 = vector.shape_cast %18 : vector<1x256xi1> to vector<1x256xi1>
    %321 = vector.broadcast %320 : vector<1x256xi1> to vector<8x256xi1>
    %322 = vector.broadcast %cst_41 : f32 to vector<8x256xf32>
    %323 = arith.select %321, %319, %322 : vector<8x256xi1>, vector<8x256xf32>
    %324 = vector.extract_strided_slice %3 {offsets = [0, 7], sizes = [8, 1], strides = [1, 1]} : vector<8x9xf32> to vector<8x1xf32>
    %325 = vector.broadcast %324 : vector<8x1xf32> to vector<8x256xf32>
    %326 = arith.mulf %323, %325 : vector<8x256xf32>
    %327 = arith.addf %318, %326 : vector<8x256xf32>
    %c239_i32_42 = arith.constant 239 : i32
    %328 = tpu.dynamic_rotate %256 by %c239_i32_42 dim 1 : vector<8x256xf32>, i32 -> vector<8x256xf32>
    %329 = arith.andi %18, %22 : vector<1x256xi1>
    %cst_43 = arith.constant 0.000000e+00 : f32
    %330 = vector.shape_cast %329 : vector<1x256xi1> to vector<1x256xi1>
    %331 = vector.broadcast %330 : vector<1x256xi1> to vector<8x256xi1>
    %332 = vector.broadcast %cst_43 : f32 to vector<8x256xf32>
    %333 = arith.select %331, %328, %332 : vector<8x256xi1>, vector<8x256xf32>
    %334 = vector.extract_strided_slice %3 {offsets = [0, 8], sizes = [8, 1], strides = [1, 1]} : vector<8x9xf32> to vector<8x1xf32>
    %335 = vector.broadcast %334 : vector<8x1xf32> to vector<8x256xf32>
    %336 = arith.mulf %333, %335 : vector<8x256xf32>
    %337 = arith.addf %327, %336 : vector<8x256xf32>
    %338 = vector.broadcast %7 : vector<8x1xf32> to vector<8x256xf32>
    %339 = arith.addf %337, %338 : vector<8x256xf32>
    %cst_44 = arith.constant 0.000000e+00 : f32
    %340 = vector.broadcast %cst_44 : f32 to vector<8x256xf32>
    %341 = arith.maximumf %339, %340 : vector<8x256xf32>
    %cst_45 = arith.constant 6.000000e+00 : f32
    %342 = vector.broadcast %cst_45 : f32 to vector<8x256xf32>
    %343 = arith.minimumf %341, %342 : vector<8x256xf32>
    %cst_46 = arith.constant 0.000000e+00 : f32
    %344 = vector.broadcast %cst_46 : f32 to vector<4x256xf32>
    %345 = vector.extract_strided_slice %343 {offsets = [0, 0], sizes = [1, 256], strides = [1, 1]} : vector<8x256xf32> to vector<1x256xf32>
    %346 = vector.extract_strided_slice %4 {offsets = [0, 0], sizes = [4, 1], strides = [1, 1]} : vector<4x8xf32> to vector<4x1xf32>
    %347 = vector.broadcast %345 : vector<1x256xf32> to vector<4x256xf32>
    %348 = vector.broadcast %346 : vector<4x1xf32> to vector<4x256xf32>
    %349 = arith.mulf %347, %348 : vector<4x256xf32>
    %350 = arith.addf %344, %349 : vector<4x256xf32>
    %351 = vector.extract_strided_slice %343 {offsets = [1, 0], sizes = [1, 256], strides = [1, 1]} : vector<8x256xf32> to vector<1x256xf32>
    %352 = vector.extract_strided_slice %4 {offsets = [0, 1], sizes = [4, 1], strides = [1, 1]} : vector<4x8xf32> to vector<4x1xf32>
    %353 = vector.broadcast %351 : vector<1x256xf32> to vector<4x256xf32>
    %354 = vector.broadcast %352 : vector<4x1xf32> to vector<4x256xf32>
    %355 = arith.mulf %353, %354 : vector<4x256xf32>
    %356 = arith.addf %350, %355 : vector<4x256xf32>
    %357 = vector.extract_strided_slice %343 {offsets = [2, 0], sizes = [1, 256], strides = [1, 1]} : vector<8x256xf32> to vector<1x256xf32>
    %358 = vector.extract_strided_slice %4 {offsets = [0, 2], sizes = [4, 1], strides = [1, 1]} : vector<4x8xf32> to vector<4x1xf32>
    %359 = vector.broadcast %357 : vector<1x256xf32> to vector<4x256xf32>
    %360 = vector.broadcast %358 : vector<4x1xf32> to vector<4x256xf32>
    %361 = arith.mulf %359, %360 : vector<4x256xf32>
    %362 = arith.addf %356, %361 : vector<4x256xf32>
    %363 = vector.extract_strided_slice %343 {offsets = [3, 0], sizes = [1, 256], strides = [1, 1]} : vector<8x256xf32> to vector<1x256xf32>
    %364 = vector.extract_strided_slice %4 {offsets = [0, 3], sizes = [4, 1], strides = [1, 1]} : vector<4x8xf32> to vector<4x1xf32>
    %365 = vector.broadcast %363 : vector<1x256xf32> to vector<4x256xf32>
    %366 = vector.broadcast %364 : vector<4x1xf32> to vector<4x256xf32>
    %367 = arith.mulf %365, %366 : vector<4x256xf32>
    %368 = arith.addf %362, %367 : vector<4x256xf32>
    %369 = vector.extract_strided_slice %343 {offsets = [4, 0], sizes = [1, 256], strides = [1, 1]} : vector<8x256xf32> to vector<1x256xf32>
    %370 = vector.extract_strided_slice %4 {offsets = [0, 4], sizes = [4, 1], strides = [1, 1]} : vector<4x8xf32> to vector<4x1xf32>
    %371 = vector.broadcast %369 : vector<1x256xf32> to vector<4x256xf32>
    %372 = vector.broadcast %370 : vector<4x1xf32> to vector<4x256xf32>
    %373 = arith.mulf %371, %372 : vector<4x256xf32>
    %374 = arith.addf %368, %373 : vector<4x256xf32>
    %375 = vector.extract_strided_slice %343 {offsets = [5, 0], sizes = [1, 256], strides = [1, 1]} : vector<8x256xf32> to vector<1x256xf32>
    %376 = vector.extract_strided_slice %4 {offsets = [0, 5], sizes = [4, 1], strides = [1, 1]} : vector<4x8xf32> to vector<4x1xf32>
    %377 = vector.broadcast %375 : vector<1x256xf32> to vector<4x256xf32>
    %378 = vector.broadcast %376 : vector<4x1xf32> to vector<4x256xf32>
    %379 = arith.mulf %377, %378 : vector<4x256xf32>
    %380 = arith.addf %374, %379 : vector<4x256xf32>
    %381 = vector.extract_strided_slice %343 {offsets = [6, 0], sizes = [1, 256], strides = [1, 1]} : vector<8x256xf32> to vector<1x256xf32>
    %382 = vector.extract_strided_slice %4 {offsets = [0, 6], sizes = [4, 1], strides = [1, 1]} : vector<4x8xf32> to vector<4x1xf32>
    %383 = vector.broadcast %381 : vector<1x256xf32> to vector<4x256xf32>
    %384 = vector.broadcast %382 : vector<4x1xf32> to vector<4x256xf32>
    %385 = arith.mulf %383, %384 : vector<4x256xf32>
    %386 = arith.addf %380, %385 : vector<4x256xf32>
    %387 = vector.extract_strided_slice %343 {offsets = [7, 0], sizes = [1, 256], strides = [1, 1]} : vector<8x256xf32> to vector<1x256xf32>
    %388 = vector.extract_strided_slice %4 {offsets = [0, 7], sizes = [4, 1], strides = [1, 1]} : vector<4x8xf32> to vector<4x1xf32>
    %389 = vector.broadcast %387 : vector<1x256xf32> to vector<4x256xf32>
    %390 = vector.broadcast %388 : vector<4x1xf32> to vector<4x256xf32>
    %391 = arith.mulf %389, %390 : vector<4x256xf32>
    %392 = arith.addf %386, %391 : vector<4x256xf32>
    %393 = vector.broadcast %8 : vector<4x1xf32> to vector<4x256xf32>
    %394 = arith.addf %392, %393 : vector<4x256xf32>
    %cst_47 = arith.constant 0.000000e+00 : f32
    %395 = vector.broadcast %cst_47 : f32 to vector<4x256xf32>
    %396 = arith.maximumf %394, %395 : vector<4x256xf32>
    %cst_48 = arith.constant 6.000000e+00 : f32
    %397 = vector.broadcast %cst_48 : f32 to vector<4x256xf32>
    %398 = arith.minimumf %396, %397 : vector<4x256xf32>
    %cst_49 = arith.constant 0.000000e+00 : f32
    %399 = vector.broadcast %cst_49 : f32 to vector<4x256xf32>
    %400 = vector.extract_strided_slice %398 {offsets = [0, 0], sizes = [1, 256], strides = [1, 1]} : vector<4x256xf32> to vector<1x256xf32>
    %401 = vector.extract_strided_slice %5 {offsets = [0, 0], sizes = [4, 1], strides = [1, 1]} : vector<4x4xf32> to vector<4x1xf32>
    %402 = vector.broadcast %400 : vector<1x256xf32> to vector<4x256xf32>
    %403 = vector.broadcast %401 : vector<4x1xf32> to vector<4x256xf32>
    %404 = arith.mulf %402, %403 : vector<4x256xf32>
    %405 = arith.addf %399, %404 : vector<4x256xf32>
    %406 = vector.extract_strided_slice %398 {offsets = [1, 0], sizes = [1, 256], strides = [1, 1]} : vector<4x256xf32> to vector<1x256xf32>
    %407 = vector.extract_strided_slice %5 {offsets = [0, 1], sizes = [4, 1], strides = [1, 1]} : vector<4x4xf32> to vector<4x1xf32>
    %408 = vector.broadcast %406 : vector<1x256xf32> to vector<4x256xf32>
    %409 = vector.broadcast %407 : vector<4x1xf32> to vector<4x256xf32>
    %410 = arith.mulf %408, %409 : vector<4x256xf32>
    %411 = arith.addf %405, %410 : vector<4x256xf32>
    %412 = vector.extract_strided_slice %398 {offsets = [2, 0], sizes = [1, 256], strides = [1, 1]} : vector<4x256xf32> to vector<1x256xf32>
    %413 = vector.extract_strided_slice %5 {offsets = [0, 2], sizes = [4, 1], strides = [1, 1]} : vector<4x4xf32> to vector<4x1xf32>
    %414 = vector.broadcast %412 : vector<1x256xf32> to vector<4x256xf32>
    %415 = vector.broadcast %413 : vector<4x1xf32> to vector<4x256xf32>
    %416 = arith.mulf %414, %415 : vector<4x256xf32>
    %417 = arith.addf %411, %416 : vector<4x256xf32>
    %418 = vector.extract_strided_slice %398 {offsets = [3, 0], sizes = [1, 256], strides = [1, 1]} : vector<4x256xf32> to vector<1x256xf32>
    %419 = vector.extract_strided_slice %5 {offsets = [0, 3], sizes = [4, 1], strides = [1, 1]} : vector<4x4xf32> to vector<4x1xf32>
    %420 = vector.broadcast %418 : vector<1x256xf32> to vector<4x256xf32>
    %421 = vector.broadcast %419 : vector<4x1xf32> to vector<4x256xf32>
    %422 = arith.mulf %420, %421 : vector<4x256xf32>
    %423 = arith.addf %417, %422 : vector<4x256xf32>
    %424 = vector.broadcast %9 : vector<4x1xf32> to vector<4x256xf32>
    %425 = arith.addf %423, %424 : vector<4x256xf32>
    %426 = arith.addf %425, %225 : vector<4x256xf32>
    %427 = tpu.concatenate %224, %426 in 0 : vector<4x256xf32>, vector<4x256xf32> -> vector<8x256xf32>
    %c0_50 = arith.constant 0 : index
    %c0_51 = arith.constant 0 : index
    %428 = vector.load %arg2[%c0_50, %c0_51] : memref<8x256xf32, #tpu.memory_space<vmem>>, vector<8x256xf32>
    tpu.vector_store %arg2[%c0_50, %c0_51], %427 {strides = array<i32>} : memref<8x256xf32, #tpu.memory_space<vmem>>, vector<8x256xf32>,
    return
  }
}

</mosaic_0001>

<llo_original>
// kernel: residual_block.1
$region0: #{residual_block.1}
  #allocation0 [shape = 'u32[]', space=smem, size = 0x4, offset = 0x4, fixed_abs, tag = 'smem constant byte address 0x4 - core index']
  #allocation1 [shape = 'u32[72,128]{1,0:T(1,128)}', space=vmem, size = 0x9000, scoped, tag = 'internal scratch']
  %s0 = inlined_call_operand.vmem [shape: f32[8,256], index: 0, kind: input, shape index: {}, may-alias: {0,2}]
  %s1 = inlined_call_operand.vmem [shape: f32[8,29], index: 1, kind: input, shape index: {}]
  %s2 = inlined_call_operand.vmem [shape: f32[8,256], index: 2, kind: output, shape index: {}, may-alias: {0,2}]
  %s3 = sld [smem:[#allocation0]]
  $region18: #{residual_block.1} parent=0
    _
  %s5 = ssub.s32 1, %s3
  %s6 = scalar_select 0, %s5, %s3
  // Predicated region
  $region2: #{residual_block.1} parent=0 // pred_check
    _
  $region3: #{residual_block.1} parent=0 // pred_check_branch
    %8 = sbr.rel (0) target = $region5
  $region4: #{residual_block.1} parent=0 // pred_region
    _
  $region5: #{residual_block.1} parent=0 // pred_fallthru
    _
  // Predicated region
  $region6: #{residual_block.1} parent=0 // pred_check
    _
  $region7: #{residual_block.1} parent=0 // pred_check_branch
    %10 = sbr.rel (0) target = $region9
  $region8: #{residual_block.1} parent=0 // pred_region
    _
  $region9: #{residual_block.1} parent=0 // pred_fallthru
    _
  %v11 = vld [vmem:[%s0] sm:$0xff]
  %v12 = vld [vmem:[%s0 + $0x8] sm:$0xff]
  %v13 = vld [vmem:[%s1] sm:$0xff]
  %v14 = vlaneseq
  %v15 = vand.u32 %v14, 127
  %v16 = vadd.s32 %v15, 128
  %v17 = vshra.s32 %v15, 4
  %v18 = vshra.s32 %v16, 4
  %v19 = vand.u32 %v15, 15
  %v20 = vand.u32 %v16, 15
  %vm21 = vcmp.ge.s32.totalorder %v17, 1
  %vm22 = vcmp.ge.s32.totalorder %v18, 1
  %vm23 = vcmp.le.s32.totalorder %v17, 14
  %vm24 = vcmp.le.s32.totalorder %v18, 14
  %vm25 = vcmp.ge.s32.totalorder %v19, 1
  %vm26 = vcmp.ge.s32.totalorder %v20, 1
  %vm27 = vcmp.le.s32.totalorder %v19, 14
  %vm28 = vcmp.le.s32.totalorder %v20, 14
  %v29 = vperm.slane %v11, 0
  %v30 = vperm.slane %v12, 0
  %32 = vset.pattern.permute.xlu0 0
  %33 = vperm.xlu0 %32, %v13
  %v34 = vpop.permute.xlu0 %33
  %v36 = vmul.f32 %v29, %v34
  %v37 = vmul.f32 %v30, %v34
  %v38 = vadd.f32 %v36, 0.0
  %v39 = vadd.f32 %v37, 0.0
  %v40 = vperm.slane %v11, 1
  %v41 = vperm.slane %v12, 1
  %42 = vset.pattern.permute.xlu0 1
  %43 = vperm.xlu0 %42, %v13
  %v44 = vpop.permute.xlu0 %43
  %v46 = vmul.f32 %v40, %v44
  %v47 = vmul.f32 %v41, %v44
  %v48 = vadd.f32 %v38, %v46
  %v49 = vadd.f32 %v39, %v47
  %v50 = vperm.slane %v11, 2
  %v51 = vperm.slane %v12, 2
  %52 = vset.pattern.permute.xlu0 2
  %53 = vperm.xlu0 %52, %v13
  %v54 = vpop.permute.xlu0 %53
  %v56 = vmul.f32 %v50, %v54
  %v57 = vmul.f32 %v51, %v54
  %v58 = vadd.f32 %v48, %v56
  %v59 = vadd.f32 %v49, %v57
  %v60 = vperm.slane %v11, 3
  %v61 = vperm.slane %v12, 3
  %62 = vset.pattern.permute.xlu0 3
  %63 = vperm.xlu0 %62, %v13
  %v64 = vpop.permute.xlu0 %63
  %v66 = vmul.f32 %v60, %v64
  %v67 = vmul.f32 %v61, %v64
  %v68 = vadd.f32 %v58, %v66
  %v69 = vadd.f32 %v59, %v67
  %70 = vset.pattern.permute.xlu0 25
  %71 = vperm.xlu0 %70, %v13
  %v72 = vpop.permute.xlu0 %71
  %v74 = vadd.f32 %v68, %v72
  %v75 = vadd.f32 %v69, %v72
  %v76 = vmax.f32 %v74, 0.0
  %v77 = vmax.f32 %v75, 0.0
  %v78 = vmin.f32 %v76, 6.0
  %v79 = vmin.f32 %v77, 6.0
  %80 = vrot.lane.b32.xlu0 %v78, 17
  %v81 = vpop.permute.xlu0 %80
  %82 = vrot.lane.b32.xlu0 %v79, 17
  %v83 = vpop.permute.xlu0 %82
  %vm84 = vcmp.lt.s32.totalorder %v15, 17
  %v85 = vsel %vm84, %v81, %v83
  %v86 = vsel %vm84, %v83, %v81
  %vm87 = vmand %vm21, %vm25
  %vm88 = vmand %vm22, %vm26
  %v89 = vsel %vm87, 1, 0
  %v90 = vsel %vm88, 1, 0
  %vm91 = vcmp.eq.s32.totalorder %v89, 1
  %vm92 = vcmp.eq.s32.totalorder %v90, 1
  %v93 = vsel %vm91, %v86, 0.0
  %v94 = vsel %vm92, %v85, 0.0
  %95 = vset.pattern.permute.xlu0 4
  %96 = vperm.xlu0 %95, %v13
  %v97 = vpop.permute.xlu0 %96
  %v99 = vmul.f32 %v93, %v97
  %v100 = vmul.f32 %v94, %v97
  %v101 = vadd.f32 %v99, 0.0
  %v102 = vadd.f32 %v100, 0.0
  %103 = vrot.lane.b32.xlu0 %v78, 16
  %v104 = vpop.permute.xlu0 %103
  %105 = vrot.lane.b32.xlu0 %v79, 16
  %v106 = vpop.permute.xlu0 %105
  %vm107 = vcmp.lt.s32.totalorder %v15, 16
  %v108 = vsel %vm107, %v104, %v106
  %v109 = vsel %vm107, %v106, %v104
  %v110 = vsel %vm21, 1, 0
  %v111 = vsel %vm22, 1, 0
  %vm112 = vcmp.eq.s32.totalorder %v110, 1
  %vm113 = vcmp.eq.s32.totalorder %v111, 1
  %v114 = vsel %vm112, %v109, 0.0
  %v115 = vsel %vm113, %v108, 0.0
  %116 = vset.pattern.permute.xlu0 5
  %117 = vperm.xlu0 %116, %v13
  %v118 = vpop.permute.xlu0 %117
  %v120 = vmul.f32 %v114, %v118
  %v121 = vmul.f32 %v115, %v118
  %v122 = vadd.f32 %v101, %v120
  %v123 = vadd.f32 %v102, %v121
  %124 = vrot.lane.b32.xlu0 %v78, 15
  %v125 = vpop.permute.xlu0 %124
  %126 = vrot.lane.b32.xlu0 %v79, 15
  %v127 = vpop.permute.xlu0 %126
  %vm128 = vcmp.lt.s32.totalorder %v15, 15
  %v129 = vsel %vm128, %v125, %v127
  %v130 = vsel %vm128, %v127, %v125
  %vm131 = vmand %vm21, %vm27
  %vm132 = vmand %vm22, %vm28
  %v133 = vsel %vm131, 1, 0
  %v134 = vsel %vm132, 1, 0
  %vm135 = vcmp.eq.s32.totalorder %v133, 1
  %vm136 = vcmp.eq.s32.totalorder %v134, 1
  %v137 = vsel %vm135, %v130, 0.0
  %v138 = vsel %vm136, %v129, 0.0
  %139 = vset.pattern.permute.xlu0 6
  %140 = vperm.xlu0 %139, %v13
  %v141 = vpop.permute.xlu0 %140
  %v143 = vmul.f32 %v137, %v141
  %v144 = vmul.f32 %v138, %v141
  %v145 = vadd.f32 %v122, %v143
  %v146 = vadd.f32 %v123, %v144
  %147 = vrot.lane.b32.xlu0 %v78, 1
  %v148 = vpop.permute.xlu0 %147
  %149 = vrot.lane.b32.xlu0 %v79, 1
  %v150 = vpop.permute.xlu0 %149
  %vm151 = vcmp.lt.s32.totalorder %v15, 1
  %v152 = vsel %vm151, %v148, %v150
  %v153 = vsel %vm151, %v150, %v148
  %v154 = vsel %vm25, 1, 0
  %v155 = vsel %vm26, 1, 0
  %vm156 = vcmp.eq.s32.totalorder %v154, 1
  %vm157 = vcmp.eq.s32.totalorder %v155, 1
  %v158 = vsel %vm156, %v153, 0.0
  %v159 = vsel %vm157, %v152, 0.0
  %160 = vset.pattern.permute.xlu0 7
  %161 = vperm.xlu0 %160, %v13
  %v162 = vpop.permute.xlu0 %161
  %v164 = vmul.f32 %v158, %v162
  %v165 = vmul.f32 %v159, %v162
  %v166 = vadd.f32 %v145, %v164
  %v167 = vadd.f32 %v146, %v165
  %168 = vset.pattern.permute.xlu0 8
  %169 = vperm.xlu0 %168, %v13
  %v170 = vpop.permute.xlu0 %169
  %v172 = vmul.f32 %v78, %v170
  %v173 = vmul.f32 %v79, %v170
  %v174 = vadd.f32 %v166, %v172
  %v175 = vadd.f32 %v167, %v173
  %176 = vrot.lane.b32.xlu0 %v78, 127
  %v177 = vpop.permute.xlu0 %176
  %178 = vrot.lane.b32.xlu0 %v79, 127
  %v179 = vpop.permute.xlu0 %178
  %vm180 = vcmp.lt.s32.totalorder %v15, 127
  %v181 = vsel %vm180, %v177, %v179
  %v182 = vsel %vm180, %v179, %v177
  %v183 = vsel %vm27, 1, 0
  %v184 = vsel %vm28, 1, 0
  %vm185 = vcmp.eq.s32.totalorder %v183, 1
  %vm186 = vcmp.eq.s32.totalorder %v184, 1
  %v187 = vsel %vm185, %v181, 0.0
  %v188 = vsel %vm186, %v182, 0.0
  %189 = vset.pattern.permute.xlu0 9
  %190 = vperm.xlu0 %189, %v13
  %v191 = vpop.permute.xlu0 %190
  %v193 = vmul.f32 %v187, %v191
  %v194 = vmul.f32 %v188, %v191
  %v195 = vadd.f32 %v174, %v193
  %v196 = vadd.f32 %v175, %v194
  %197 = vrot.lane.b32.xlu0 %v78, 113
  %v198 = vpop.permute.xlu0 %197
  %199 = vrot.lane.b32.xlu0 %v79, 113
  %v200 = vpop.permute.xlu0 %199
  %vm201 = vcmp.lt.s32.totalorder %v15, 113
  %v202 = vsel %vm201, %v198, %v200
  %v203 = vsel %vm201, %v200, %v198
  %vm204 = vmand %vm23, %vm25
  %vm205 = vmand %vm24, %vm26
  %v206 = vsel %vm204, 1, 0
  %v207 = vsel %vm205, 1, 0
  %vm208 = vcmp.eq.s32.totalorder %v206, 1
  %vm209 = vcmp.eq.s32.totalorder %v207, 1
  %v210 = vsel %vm208, %v202, 0.0
  %v211 = vsel %vm209, %v203, 0.0
  %212 = vset.pattern.permute.xlu0 10
  %213 = vperm.xlu0 %212, %v13
  %v214 = vpop.permute.xlu0 %213
  %v216 = vmul.f32 %v210, %v214
  %v217 = vmul.f32 %v211, %v214
  %v218 = vadd.f32 %v195, %v216
  %v219 = vadd.f32 %v196, %v217
  %220 = vrot.lane.b32.xlu0 %v78, 112
  %v221 = vpop.permute.xlu0 %220
  %222 = vrot.lane.b32.xlu0 %v79, 112
  %v223 = vpop.permute.xlu0 %222
  %vm224 = vcmp.lt.s32.totalorder %v15, 112
  %v225 = vsel %vm224, %v221, %v223
  %v226 = vsel %vm224, %v223, %v221
  %v227 = vsel %vm23, 1, 0
  %v228 = vsel %vm24, 1, 0
  %vm229 = vcmp.eq.s32.totalorder %v227, 1
  %vm230 = vcmp.eq.s32.totalorder %v228, 1
  %v231 = vsel %vm229, %v225, 0.0
  %v232 = vsel %vm230, %v226, 0.0
  %233 = vset.pattern.permute.xlu0 11
  %234 = vperm.xlu0 %233, %v13
  %v235 = vpop.permute.xlu0 %234
  %v237 = vmul.f32 %v231, %v235
  %v238 = vmul.f32 %v232, %v235
  %v239 = vadd.f32 %v218, %v237
  %v240 = vadd.f32 %v219, %v238
  %241 = vrot.lane.b32.xlu0 %v78, 111
  %v242 = vpop.permute.xlu0 %241
  %243 = vrot.lane.b32.xlu0 %v79, 111
  %v244 = vpop.permute.xlu0 %243
  %vm245 = vcmp.lt.s32.totalorder %v15, 111
  %v246 = vsel %vm245, %v242, %v244
  %v247 = vsel %vm245, %v244, %v242
  %vm248 = vmand %vm23, %vm27
  %vm249 = vmand %vm24, %vm28
  %v250 = vsel %vm248, 1, 0
  %v251 = vsel %vm249, 1, 0
  %vm252 = vcmp.eq.s32.totalorder %v250, 1
  %vm253 = vcmp.eq.s32.totalorder %v251, 1
  %v254 = vsel %vm252, %v246, 0.0
  %v255 = vsel %vm253, %v247, 0.0
  %256 = vset.pattern.permute.xlu0 12
  %257 = vperm.xlu0 %256, %v13
  %v258 = vpop.permute.xlu0 %257
  %v260 = vmul.f32 %v254, %v258
  %v261 = vmul.f32 %v255, %v258
  %v262 = vadd.f32 %v239, %v260
  %v263 = vadd.f32 %v240, %v261
  %264 = vset.pattern.permute.xlu0 26
  %265 = vperm.xlu0 %264, %v13
  %v266 = vpop.permute.xlu0 %265
  %v268 = vadd.f32 %v262, %v266
  %v269 = vadd.f32 %v263, %v266
  %v270 = vmax.f32 %v268, 0.0
  %v271 = vmax.f32 %v269, 0.0
  %v272 = vmin.f32 %v270, 6.0
  %v273 = vmin.f32 %v271, 6.0
  %v274 = vperm.slane %v272, 0
  %v275 = vperm.slane %v273, 0
  %276 = vset.pattern.permute.xlu0 13
  %277 = vperm.xlu0 %276, %v13
  %v278 = vpop.permute.xlu0 %277
  %v280 = vmul.f32 %v274, %v278
  %v281 = vmul.f32 %v275, %v278
  %v282 = vadd.f32 %v280, 0.0
  %v283 = vadd.f32 %v281, 0.0
  %v284 = vperm.slane %v272, 1
  %v285 = vperm.slane %v273, 1
  %286 = vset.pattern.permute.xlu0 14
  %287 = vperm.xlu0 %286, %v13
  %v288 = vpop.permute.xlu0 %287
  %v290 = vmul.f32 %v284, %v288
  %v291 = vmul.f32 %v285, %v288
  %v292 = vadd.f32 %v282, %v290
  %v293 = vadd.f32 %v283, %v291
  %v294 = vperm.slane %v272, 2
  %v295 = vperm.slane %v273, 2
  %296 = vset.pattern.permute.xlu0 15
  %297 = vperm.xlu0 %296, %v13
  %v298 = vpop.permute.xlu0 %297
  %v300 = vmul.f32 %v294, %v298
  %v301 = vmul.f32 %v295, %v298
  %v302 = vadd.f32 %v292, %v300
  %v303 = vadd.f32 %v293, %v301
  %v304 = vperm.slane %v272, 3
  %v305 = vperm.slane %v273, 3
  %306 = vset.pattern.permute.xlu0 16
  %307 = vperm.xlu0 %306, %v13
  %v308 = vpop.permute.xlu0 %307
  %v310 = vmul.f32 %v304, %v308
  %v311 = vmul.f32 %v305, %v308
  %v312 = vadd.f32 %v302, %v310
  %v313 = vadd.f32 %v303, %v311
  %v314 = vperm.slane %v272, 4
  %v315 = vperm.slane %v273, 4
  %316 = vset.pattern.permute.xlu0 17
  %317 = vperm.xlu0 %316, %v13
  %v318 = vpop.permute.xlu0 %317
  %v320 = vmul.f32 %v314, %v318
  %v321 = vmul.f32 %v315, %v318
  %v322 = vadd.f32 %v312, %v320
  %v323 = vadd.f32 %v313, %v321
  %v324 = vperm.slane %v272, 5
  %v325 = vperm.slane %v273, 5
  %326 = vset.pattern.permute.xlu0 18
  %327 = vperm.xlu0 %326, %v13
  %v328 = vpop.permute.xlu0 %327
  %v330 = vmul.f32 %v324, %v328
  %v331 = vmul.f32 %v325, %v328
  %v332 = vadd.f32 %v322, %v330
  %v333 = vadd.f32 %v323, %v331
  %v334 = vperm.slane %v272, 6
  %v335 = vperm.slane %v273, 6
  %336 = vset.pattern.permute.xlu0 19
  %337 = vperm.xlu0 %336, %v13
  %v338 = vpop.permute.xlu0 %337
  %v340 = vmul.f32 %v334, %v338
  %v341 = vmul.f32 %v335, %v338
  %v342 = vadd.f32 %v332, %v340
  %v343 = vadd.f32 %v333, %v341
  %v344 = vperm.slane %v272, 7
  %v345 = vperm.slane %v273, 7
  %346 = vset.pattern.permute.xlu0 20
  %347 = vperm.xlu0 %346, %v13
  %v348 = vpop.permute.xlu0 %347
  %v350 = vmul.f32 %v344, %v348
  %v351 = vmul.f32 %v345, %v348
  %v352 = vadd.f32 %v342, %v350
  %v353 = vadd.f32 %v343, %v351
  %354 = vset.pattern.permute.xlu0 27
  %355 = vperm.xlu0 %354, %v13
  %v356 = vpop.permute.xlu0 %355
  %v358 = vadd.f32 %v352, %v356
  %v359 = vadd.f32 %v353, %v356
  %v360 = vmax.f32 %v358, 0.0
  %v361 = vmax.f32 %v359, 0.0
  %v362 = vmin.f32 %v360, 6.0
  %v363 = vmin.f32 %v361, 6.0
  %v364 = vperm.slane %v362, 0
  %v365 = vperm.slane %v363, 0
  %366 = vset.pattern.permute.xlu0 21
  %367 = vperm.xlu0 %366, %v13
  %v368 = vpop.permute.xlu0 %367
  %v370 = vmul.f32 %v364, %v368
  %v371 = vmul.f32 %v365, %v368
  %v372 = vadd.f32 %v370, 0.0
  %v373 = vadd.f32 %v371, 0.0
  %v374 = vperm.slane %v362, 1
  %v375 = vperm.slane %v363, 1
  %376 = vset.pattern.permute.xlu0 22
  %377 = vperm.xlu0 %376, %v13
  %v378 = vpop.permute.xlu0 %377
  %v380 = vmul.f32 %v374, %v378
  %v381 = vmul.f32 %v375, %v378
  %v382 = vadd.f32 %v372, %v380
  %v383 = vadd.f32 %v373, %v381
  %v384 = vperm.slane %v362, 2
  %v385 = vperm.slane %v363, 2
  %386 = vset.pattern.permute.xlu0 23
  %387 = vperm.xlu0 %386, %v13
  %v388 = vpop.permute.xlu0 %387
  %v390 = vmul.f32 %v384, %v388
  %v391 = vmul.f32 %v385, %v388
  %v392 = vadd.f32 %v382, %v390
  %v393 = vadd.f32 %v383, %v391
  %v394 = vperm.slane %v362, 3
  %v395 = vperm.slane %v363, 3
  %396 = vset.pattern.permute.xlu0 24
  %397 = vperm.xlu0 %396, %v13
  %v398 = vpop.permute.xlu0 %397
  %v400 = vmul.f32 %v394, %v398
  %v401 = vmul.f32 %v395, %v398
  %v402 = vadd.f32 %v392, %v400
  %v403 = vadd.f32 %v393, %v401
  %404 = vset.pattern.permute.xlu0 28
  %405 = vperm.xlu0 %404, %v13
  %v406 = vpop.permute.xlu0 %405
  %v408 = vadd.f32 %v402, %v406
  %v409 = vadd.f32 %v403, %v406
  %v410 = vadd.f32 %v408, %v11
  %v411 = vadd.f32 %v409, %v12
  %v412 = vperm.slane %v11, 4
  %v413 = vperm.slane %v12, 4
  %v414 = vmul.f32 %v412, %v34
  %v415 = vmul.f32 %v413, %v34
  %v416 = vadd.f32 %v414, 0.0
  %v417 = vadd.f32 %v415, 0.0
  %v418 = vperm.slane %v11, 5
  %v419 = vperm.slane %v12, 5
  %v420 = vmul.f32 %v418, %v44
  %v421 = vmul.f32 %v419, %v44
  %v422 = vadd.f32 %v416, %v420
  %v423 = vadd.f32 %v417, %v421
  %v424 = vperm.slane %v11, 6
  %v425 = vperm.slane %v12, 6
  %v426 = vmul.f32 %v424, %v54
  %v427 = vmul.f32 %v425, %v54
  %v428 = vadd.f32 %v422, %v426
  %v429 = vadd.f32 %v423, %v427
  %v430 = vperm.slane %v11, 7
  %v431 = vperm.slane %v12, 7
  %v432 = vmul.f32 %v430, %v64
  %v433 = vmul.f32 %v431, %v64
  %v434 = vadd.f32 %v428, %v432
  %v435 = vadd.f32 %v429, %v433
  %v436 = vadd.f32 %v434, %v72
  %v437 = vadd.f32 %v435, %v72
  %v438 = vmax.f32 %v436, 0.0
  %v439 = vmax.f32 %v437, 0.0
  %v440 = vmin.f32 %v438, 6.0
  %v441 = vmin.f32 %v439, 6.0
  %442 = vrot.lane.b32.xlu0 %v440, 17
  %v443 = vpop.permute.xlu0 %442
  %444 = vrot.lane.b32.xlu0 %v441, 17
  %v445 = vpop.permute.xlu0 %444
  %v446 = vsel %vm84, %v443, %v445
  %v447 = vsel %vm84, %v445, %v443
  %v448 = vsel %vm91, %v447, 0.0
  %v449 = vsel %vm92, %v446, 0.0
  %v450 = vmul.f32 %v448, %v97
  %v451 = vmul.f32 %v449, %v97
  %v452 = vadd.f32 %v450, 0.0
  %v453 = vadd.f32 %v451, 0.0
  %454 = vrot.lane.b32.xlu0 %v440, 16
  %v455 = vpop.permute.xlu0 %454
  %456 = vrot.lane.b32.xlu0 %v441, 16
  %v457 = vpop.permute.xlu0 %456
  %v458 = vsel %vm107, %v455, %v457
  %v459 = vsel %vm107, %v457, %v455
  %v460 = vsel %vm112, %v459, 0.0
  %v461 = vsel %vm113, %v458, 0.0
  %v462 = vmul.f32 %v460, %v118
  %v463 = vmul.f32 %v461, %v118
  %v464 = vadd.f32 %v452, %v462
  %v465 = vadd.f32 %v453, %v463
  %466 = vrot.lane.b32.xlu0 %v440, 15
  %v467 = vpop.permute.xlu0 %466
  %468 = vrot.lane.b32.xlu0 %v441, 15
  %v469 = vpop.permute.xlu0 %468
  %v470 = vsel %vm128, %v467, %v469
  %v471 = vsel %vm128, %v469, %v467
  %v472 = vsel %vm135, %v471, 0.0
  %v473 = vsel %vm136, %v470, 0.0
  %v474 = vmul.f32 %v472, %v141
  %v475 = vmul.f32 %v473, %v141
  %v476 = vadd.f32 %v464, %v474
  %v477 = vadd.f32 %v465, %v475
  %478 = vrot.lane.b32.xlu0 %v440, 1
  %v479 = vpop.permute.xlu0 %478
  %480 = vrot.lane.b32.xlu0 %v441, 1
  %v481 = vpop.permute.xlu0 %480
  %v482 = vsel %vm151, %v479, %v481
  %v483 = vsel %vm151, %v481, %v479
  %v484 = vsel %vm156, %v483, 0.0
  %v485 = vsel %vm157, %v482, 0.0
  %v486 = vmul.f32 %v484, %v162
  %v487 = vmul.f32 %v485, %v162
  %v488 = vadd.f32 %v476, %v486
  %v489 = vadd.f32 %v477, %v487
  %v490 = vmul.f32 %v440, %v170
  %v491 = vmul.f32 %v441, %v170
  %v492 = vadd.f32 %v488, %v490
  %v493 = vadd.f32 %v489, %v491
  %494 = vrot.lane.b32.xlu0 %v440, 127
  %v495 = vpop.permute.xlu0 %494
  %496 = vrot.lane.b32.xlu0 %v441, 127
  %v497 = vpop.permute.xlu0 %496
  %v498 = vsel %vm180, %v495, %v497
  %v499 = vsel %vm180, %v497, %v495
  %v500 = vsel %vm185, %v498, 0.0
  %v501 = vsel %vm186, %v499, 0.0
  %v502 = vmul.f32 %v500, %v191
  %v503 = vmul.f32 %v501, %v191
  %v504 = vadd.f32 %v492, %v502
  %v505 = vadd.f32 %v493, %v503
  %506 = vrot.lane.b32.xlu0 %v440, 113
  %v507 = vpop.permute.xlu0 %506
  %508 = vrot.lane.b32.xlu0 %v441, 113
  %v509 = vpop.permute.xlu0 %508
  %v510 = vsel %vm201, %v507, %v509
  %v511 = vsel %vm201, %v509, %v507
  %v512 = vsel %vm208, %v510, 0.0
  %v513 = vsel %vm209, %v511, 0.0
  %v514 = vmul.f32 %v512, %v214
  %v515 = vmul.f32 %v513, %v214
  %v516 = vadd.f32 %v504, %v514
  %v517 = vadd.f32 %v505, %v515
  %518 = vrot.lane.b32.xlu0 %v440, 112
  %v519 = vpop.permute.xlu0 %518
  %520 = vrot.lane.b32.xlu0 %v441, 112
  %v521 = vpop.permute.xlu0 %520
  %v522 = vsel %vm224, %v519, %v521
  %v523 = vsel %vm224, %v521, %v519
  %v524 = vsel %vm229, %v522, 0.0
  %v525 = vsel %vm230, %v523, 0.0
  %v526 = vmul.f32 %v524, %v235
  %v527 = vmul.f32 %v525, %v235
  %v528 = vadd.f32 %v516, %v526
  %v529 = vadd.f32 %v517, %v527
  %530 = vrot.lane.b32.xlu0 %v440, 111
  %v531 = vpop.permute.xlu0 %530
  %532 = vrot.lane.b32.xlu0 %v441, 111
  %v533 = vpop.permute.xlu0 %532
  %v534 = vsel %vm245, %v531, %v533
  %v535 = vsel %vm245, %v533, %v531
  %v536 = vsel %vm252, %v534, 0.0
  %v537 = vsel %vm253, %v535, 0.0
  %v538 = vmul.f32 %v536, %v258
  %v539 = vmul.f32 %v537, %v258
  %v540 = vadd.f32 %v528, %v538
  %v541 = vadd.f32 %v529, %v539
  %v542 = vadd.f32 %v540, %v266
  %v543 = vadd.f32 %v541, %v266
  %v544 = vmax.f32 %v542, 0.0
  %v545 = vmax.f32 %v543, 0.0
  %v546 = vmin.f32 %v544, 6.0
  %v547 = vmin.f32 %v545, 6.0
  %v548 = vperm.slane %v546, 0
  %v549 = vperm.slane %v547, 0
  %v550 = vmul.f32 %v548, %v278
  %v551 = vmul.f32 %v549, %v278
  %v552 = vadd.f32 %v550, 0.0
  %v553 = vadd.f32 %v551, 0.0
  %v554 = vperm.slane %v546, 1
  %v555 = vperm.slane %v547, 1
  %v556 = vmul.f32 %v554, %v288
  %v557 = vmul.f32 %v555, %v288
  %v558 = vadd.f32 %v552, %v556
  %v559 = vadd.f32 %v553, %v557
  %v560 = vperm.slane %v546, 2
  %v561 = vperm.slane %v547, 2
  %v562 = vmul.f32 %v560, %v298
  %v563 = vmul.f32 %v561, %v298
  %v564 = vadd.f32 %v558, %v562
  %v565 = vadd.f32 %v559, %v563
  %v566 = vperm.slane %v546, 3
  %v567 = vperm.slane %v547, 3
  %v568 = vmul.f32 %v566, %v308
  %v569 = vmul.f32 %v567, %v308
  %v570 = vadd.f32 %v564, %v568
  %v571 = vadd.f32 %v565, %v569
  %v572 = vperm.slane %v546, 4
  %v573 = vperm.slane %v547, 4
  %v574 = vmul.f32 %v572, %v318
  %v575 = vmul.f32 %v573, %v318
  %v576 = vadd.f32 %v570, %v574
  %v577 = vadd.f32 %v571, %v575
  %v578 = vperm.slane %v546, 5
  %v579 = vperm.slane %v547, 5
  %v580 = vmul.f32 %v578, %v328
  %v581 = vmul.f32 %v579, %v328
  %v582 = vadd.f32 %v576, %v580
  %v583 = vadd.f32 %v577, %v581
  %v584 = vperm.slane %v546, 6
  %v585 = vperm.slane %v547, 6
  %v586 = vmul.f32 %v584, %v338
  %v587 = vmul.f32 %v585, %v338
  %v588 = vadd.f32 %v582, %v586
  %v589 = vadd.f32 %v583, %v587
  %v590 = vperm.slane %v546, 7
  %v591 = vperm.slane %v547, 7
  %v592 = vmul.f32 %v590, %v348
  %v593 = vmul.f32 %v591, %v348
  %v594 = vadd.f32 %v588, %v592
  %v595 = vadd.f32 %v589, %v593
  %v596 = vadd.f32 %v594, %v356
  %v597 = vadd.f32 %v595, %v356
  %v598 = vmax.f32 %v596, 0.0
  %v599 = vmax.f32 %v597, 0.0
  %v600 = vmin.f32 %v598, 6.0
  %v601 = vmin.f32 %v599, 6.0
  %v602 = vperm.slane %v600, 0
  %v603 = vperm.slane %v601, 0
  %v604 = vmul.f32 %v602, %v368
  %v605 = vmul.f32 %v603, %v368
  %v606 = vadd.f32 %v604, 0.0
  %v607 = vadd.f32 %v605, 0.0
  %v608 = vperm.slane %v600, 1
  %v609 = vperm.slane %v601, 1
  %v610 = vmul.f32 %v608, %v378
  %v611 = vmul.f32 %v609, %v378
  %v612 = vadd.f32 %v606, %v610
  %v613 = vadd.f32 %v607, %v611
  %v614 = vperm.slane %v600, 2
  %v615 = vperm.slane %v601, 2
  %v616 = vmul.f32 %v614, %v388
  %v617 = vmul.f32 %v615, %v388
  %v618 = vadd.f32 %v612, %v616
  %v619 = vadd.f32 %v613, %v617
  %v620 = vperm.slane %v600, 3
  %v621 = vperm.slane %v601, 3
  %v622 = vmul.f32 %v620, %v398
  %v623 = vmul.f32 %v621, %v398
  %v624 = vadd.f32 %v618, %v622
  %v625 = vadd.f32 %v619, %v623
  %v626 = vadd.f32 %v624, %v406
  %v627 = vadd.f32 %v625, %v406
  %v630 = vrot.slane %v11, 4
  %v631 = vrot.slane %v12, 4
  %v634 = vadd.f32 %v626, %v630
  %v635 = vadd.f32 %v627, %v631
  %v638 = vrot.slane %v634, 4
  %v639 = vrot.slane %v635, 4
  %vm642 = vcmask 1043456
  %v643 = vsel %vm642, %v410, %v638
  %v644 = vsel %vm642, %v411, %v639
  %645 = vst [vmem:[%s2] sm:$0xff] %v643
  %646 = vst [vmem:[%s2 + $0x8] sm:$0xff] %v644
  // Predicated region
  $region10: #{residual_block.1} parent=0 // pred_check
    _
  $region11: #{residual_block.1} parent=0 // pred_check_branch
    %648 = sbr.rel (0) target = $region13
  $region12: #{residual_block.1} parent=0 // pred_region
    _
  $region13: #{residual_block.1} parent=0 // pred_fallthru
    _
  // Predicated region
  $region14: #{residual_block.1} parent=0 // pred_check
    _
  $region15: #{residual_block.1} parent=0 // pred_check_branch
    %650 = sbr.rel (0) target = $region17
  $region16: #{residual_block.1} parent=0 // pred_region
    _
  $region17: #{residual_block.1} parent=0 // pred_fallthru
    _

</llo_original>
